<compile_context>
chip_gen: v5e
topology: v5e:2x2
jax: 0.10.0
libtpu: 0.0.40
codegen_flags: <defaults>
</compile_context>

<pallas_src>
import functools

import jax
import jax.numpy as jnp
from jax.experimental import pallas as pl
from jax.experimental.pallas import tpu as pltpu

_EPS = 1e-5
_H3 = 850          # fc3 output features in the PyTorch module
_H3P = 896         # lane-dense padding (7 * 128)

# Sublane rows of the packed [8, 896] `vecs` operand.
_ROW_G3 = 0        # bn3 gamma   (896)
_ROW_BE3 = 1       # bn3 beta    (896)
_ROW_W2 = 2        # fc2 weight  (10)
_ROW_B2 = 3        # fc2 bias    (10)
_ROW_B4 = 4        # fc4 bias    (50)
_ROW_W5 = 5        # fc5 weight  (50)


def _mlp_kernel(scal_ref, x_ref, w3_ref, w4_ref, vecs_ref, o_ref):
    # Scalar params from SMEM: w1, b1, gamma1, beta1, b5.
    w1 = scal_ref[0]
    b1 = scal_ref[1]
    g1 = scal_ref[2]
    be1 = scal_ref[3]
    b5 = scal_ref[4]

    x = x_ref[...]                                            # [B, 1]

    # --- fc1 (1->1) + bn1 (training-mode batch stats) + tanh : VPU/EUP/XLU.
    h1 = x * w1 + b1
    mu1 = jnp.mean(h1, axis=0, keepdims=True)
    d1 = h1 - mu1
    var1 = jnp.mean(d1 * d1, axis=0, keepdims=True)
    t = jnp.tanh(d1 * jax.lax.rsqrt(var1 + _EPS) * g1 + be1)  # [B, 1]

    # --- fc2 (1->10) as a broadcast outer product + relu : VPU only.
    w2 = vecs_ref[_ROW_W2:_ROW_W2 + 1, 0:10]                  # [1, 10]
    b2 = vecs_ref[_ROW_B2:_ROW_B2 + 1, 0:10]                  # [1, 10]
    h2 = jnp.maximum(t * w2 + b2, 0.0)                        # [B, 10]

    # --- fc3 (10 -> 896 padded) on the MXU + bn3 + relu.
    #     fc3's bias is omitted: bn3's mean subtraction cancels it exactly.
    g3 = vecs_ref[_ROW_G3:_ROW_G3 + 1, :]                     # [1, 896]
    be3 = vecs_ref[_ROW_BE3:_ROW_BE3 + 1, :]                  # [1, 896]
    h3 = jnp.dot(h2, w3_ref[...], preferred_element_type=jnp.float32)
    mu3 = jnp.mean(h3, axis=0, keepdims=True)
    d3 = h3 - mu3
    var3 = jnp.mean(d3 * d3, axis=0, keepdims=True)
    h3 = jnp.maximum(d3 * jax.lax.rsqrt(var3 + _EPS) * g3 + be3, 0.0)

    # --- fc4 (896 -> 50) on the MXU (K lane-dense = 7x128) + relu.
    b4 = vecs_ref[_ROW_B4:_ROW_B4 + 1, 0:50]                  # [1, 50]
    h4 = jnp.dot(h3, w4_ref[...], preferred_element_type=jnp.float32) + b4
    h4 = jnp.maximum(h4, 0.0)                                 # [B, 50]

    # --- fc5 (50 -> 1) as a lane reduce (no N=1 MXU pass) + relu.
    w5 = vecs_ref[_ROW_W5:_ROW_W5 + 1, 0:50]                  # [1, 50]
    out = jnp.sum(h4 * w5, axis=-1, keepdims=True) + b5       # [B, 1]
    o_ref[...] = jnp.maximum(out, 0.0).astype(o_ref.dtype)


@functools.partial(jax.jit, static_argnames=())
def linear_regression_forward(x, params):
    """x: [B, 1] float32. params: dict of raw (unpadded) weights, see init_params."""
    B = x.shape[0]
    f32 = jnp.float32

    # ---- pack / pad operands (layout plumbing, outside the kernel) ----
    # Lane-dense padding 850 -> 896 for fc3 outputs / fc4 K-dim.
    pad3 = _H3P - _H3
    w3p = jnp.pad(params["w3"].astype(f32), ((0, 0), (0, pad3)))     # [10, 896]
    w4p = jnp.pad(params["w4"].astype(f32), ((0, pad3), (0, 0)))     # [896, 50]
    g3p = jnp.pad(params["g3"].astype(f32), ((0, 0), (0, pad3)))     # [1, 896]
    be3p = jnp.pad(params["be3"].astype(f32), ((0, 0), (0, pad3)))   # [1, 896]

    # One packed [8, 896] tile (exactly one (8,128)-tiled slab) holding all
    # per-feature vectors; each small vector sits on its own sublane row at
    # lane offset 0 so in-kernel slices are aligned.
    vecs = jnp.zeros((8, _H3P), f32)
    vecs = vecs.at[_ROW_G3, :].set(g3p[0])
    vecs = vecs.at[_ROW_BE3, :].set(be3p[0])
    vecs = vecs.at[_ROW_W2, 0:10].set(params["w2"].reshape(-1).astype(f32))
    vecs = vecs.at[_ROW_B2, 0:10].set(params["b2"].reshape(-1).astype(f32))
    vecs = vecs.at[_ROW_B4, 0:50].set(params["b4"].reshape(-1).astype(f32))
    vecs = vecs.at[_ROW_W5, 0:50].set(params["w5"].reshape(-1).astype(f32))

    # Scalar params in SMEM: w1, b1, gamma1, beta1, b5.
    scal = jnp.concatenate([
        params["w1"].reshape(-1), params["b1"].reshape(-1),
        params["g1"].reshape(-1), params["be1"].reshape(-1),
        params["b5"].reshape(-1),
    ]).astype(f32)                                                    # [5]

    vmem = pl.BlockSpec(memory_space=pltpu.MemorySpace.VMEM)
    smem = pl.BlockSpec(memory_space=pltpu.MemorySpace.SMEM)

    return pl.pallas_call(
        _mlp_kernel,
        out_shape=jax.ShapeDtypeStruct((B, 1), jnp.float32),
        in_specs=[smem, vmem, vmem, vmem, vmem],
        out_specs=vmem,
        compiler_params=pltpu.CompilerParams(vmem_limit_bytes=32 * 1024 * 1024),
    )(scal, x, w3p, w4p, vecs)


def _linear_init(key, fan_in, fan_out):
    """PyTorch nn.Linear default init: U(-1/sqrt(fan_in), 1/sqrt(fan_in))."""
    kw, kb = jax.random.split(key)
    bound = 1.0 / jnp.sqrt(jnp.float32(fan_in))
    # Weight stored pre-transposed: [in, out].
    w = jax.random.uniform(kw, (fan_in, fan_out), jnp.float32, -bound, bound)
    b = jax.random.uniform(kb, (1, fan_out), jnp.float32, -bound, bound)
    return w, b


def init_params(key):
    k1, k2, k3, k4, k5 = jax.random.split(key, 5)
    w1, b1 = _linear_init(k1, 1, 1)
    w2, b2 = _linear_init(k2, 1, 10)
    w3, b3 = _linear_init(k3, 10, _H3)
    w4, b4 = _linear_init(k4, _H3, 50)
    w5, b5 = _linear_init(k5, 50, 1)
    return dict(
        w1=w1, b1=b1,
        g1=jnp.ones((1, 1), jnp.float32), be1=jnp.zeros((1, 1), jnp.float32),
        w2=w2, b2=b2,
        w3=w3, b3=b3,
        g3=jnp.ones((1, _H3), jnp.float32), be3=jnp.zeros((1, _H3), jnp.float32),
        w4=w4, b4=b4,
        w5=w5, b5=b5,
    )


def _reference_forward(x, p):
    """Pure-JAX reference (training-mode BN semantics, unpadded, with all biases)."""
    def bn(h, g, be):
        mu = jnp.mean(h, axis=0, keepdims=True)
        var = jnp.mean((h - mu) ** 2, axis=0, keepdims=True)
        return (h - mu) / jnp.sqrt(var + _EPS) * g + be

    h = x @ p["w1"] + p["b1"]
    h = jnp.tanh(bn(h, p["g1"], p["be1"]))
    h = jnp.maximum(h @ p["w2"] + p["b2"], 0.0)
    h = jnp.maximum(bn(h @ p["w3"] + p["b3"], p["g3"], p["be3"]), 0.0)
    h = jnp.maximum(h @ p["w4"] + p["b4"], 0.0)
    h = jnp.maximum(h @ p["w5"] + p["b5"], 0.0)
    return h


if __name__ == "__main__":
    key = jax.random.PRNGKey(0)
    kx, kp = jax.random.split(key)

    B = 8
    x = jax.random.normal(kx, (B, 1), jnp.float32)
    params = init_params(kp)

    out = linear_regression_forward(x, params)
    out = jax.block_until_ready(out)

    ref = _reference_forward(x, params)
    assert out.shape == (B, 1) and out.dtype == jnp.float32
    assert jnp.allclose(out, ref, atol=1e-4, rtol=1e-4)

    print("KERNEL_OK")
</pallas_src>

<mosaic_0001>
module attributes {stable_mosaic.version = 11 : i64} {
  func.func @_mlp_kernel(%arg0: memref<5xf32, #tpu.memory_space<smem>>, %arg1: memref<8x1xf32, #tpu.memory_space<vmem>>, %arg2: memref<10x896xf32, #tpu.memory_space<vmem>>, %arg3: memref<896x50xf32, #tpu.memory_space<vmem>>, %arg4: memref<8x896xf32, #tpu.memory_space<vmem>>, %arg5: memref<8x1xf32, #tpu.memory_space<vmem>>) attributes {dimension_semantics = [], scalar_prefetch = 0 : i64, scratch_operands = 0 : i64, tpu.core_type = #tpu.core_type<tc>} {
    %c0 = arith.constant 0 : index
    %0 = memref.load %arg0[%c0] : memref<5xf32, #tpu.memory_space<smem>>
    %c1 = arith.constant 1 : index
    %1 = memref.load %arg0[%c1] : memref<5xf32, #tpu.memory_space<smem>>
    %c2 = arith.constant 2 : index
    %2 = memref.load %arg0[%c2] : memref<5xf32, #tpu.memory_space<smem>>
    %c3 = arith.constant 3 : index
    %3 = memref.load %arg0[%c3] : memref<5xf32, #tpu.memory_space<smem>>
    %c4 = arith.constant 4 : index
    %4 = memref.load %arg0[%c4] : memref<5xf32, #tpu.memory_space<smem>>
    %c0_0 = arith.constant 0 : index
    %c0_1 = arith.constant 0 : index
    %5 = vector.load %arg1[%c0_0, %c0_1] : memref<8x1xf32, #tpu.memory_space<vmem>>, vector<8x1xf32>
    %6 = vector.broadcast %0 : f32 to vector<8x1xf32>
    %7 = arith.mulf %5, %6 : vector<8x1xf32>
    %8 = vector.broadcast %1 : f32 to vector<8x1xf32>
    %9 = arith.addf %7, %8 : vector<8x1xf32>
    %cst = arith.constant dense<0.000000e+00> : vector<1xf32>
    %10 = vector.multi_reduction <add>, %9, %cst [0] : vector<8x1xf32> to vector<1xf32>
    %11 = vector.shape_cast %10 : vector<1xf32> to vector<1x1xf32>
    %cst_2 = arith.constant 8.000000e+00 : f32
    %12 = vector.broadcast %cst_2 : f32 to vector<1x1xf32>
    %13 = arith.divf %11, %12 : vector<1x1xf32>
    %14 = vector.broadcast %13 : vector<1x1xf32> to vector<8x1xf32>
    %15 = arith.subf %9, %14 : vector<8x1xf32>
    %16 = arith.mulf %15, %15 : vector<8x1xf32>
    %cst_3 = arith.constant dense<0.000000e+00> : vector<1xf32>
    %17 = vector.multi_reduction <add>, %16, %cst_3 [0] : vector<8x1xf32> to vector<1xf32>
    %18 = vector.shape_cast %17 : vector<1xf32> to vector<1x1xf32>
    %cst_4 = arith.constant 8.000000e+00 : f32
    %19 = vector.broadcast %cst_4 : f32 to vector<1x1xf32>
    %20 = arith.divf %18, %19 : vector<1x1xf32>
    %cst_5 = arith.constant 9.99999974E-6 : f32
    %21 = vector.broadcast %cst_5 : f32 to vector<1x1xf32>
    %22 = arith.addf %20, %21 : vector<1x1xf32>
    %23 = math.rsqrt %22 : vector<1x1xf32>
    %24 = vector.broadcast %23 : vector<1x1xf32> to vector<8x1xf32>
    %25 = arith.mulf %15, %24 : vector<8x1xf32>
    %26 = vector.broadcast %2 : f32 to vector<8x1xf32>
    %27 = arith.mulf %25, %26 : vector<8x1xf32>
    %28 = vector.broadcast %3 : f32 to vector<8x1xf32>
    %29 = arith.addf %27, %28 : vector<8x1xf32>
    %30 = math.tanh %29 : vector<8x1xf32>
    %c2_6 = arith.constant 2 : index
    %c0_7 = arith.constant 0 : index
    %31 = vector.load %arg4[%c2_6, %c0_7] : memref<8x896xf32, #tpu.memory_space<vmem>>, vector<1x10xf32>
    %c3_8 = arith.constant 3 : index
    %c0_9 = arith.constant 0 : index
    %32 = vector.load %arg4[%c3_8, %c0_9] : memref<8x896xf32, #tpu.memory_space<vmem>>, vector<1x10xf32>
    %33 = vector.broadcast %30 : vector<8x1xf32> to vector<8x10xf32>
    %34 = vector.broadcast %31 : vector<1x10xf32> to vector<8x10xf32>
    %35 = arith.mulf %33, %34 : vector<8x10xf32>
    %36 = vector.broadcast %32 : vector<1x10xf32> to vector<8x10xf32>
    %37 = arith.addf %35, %36 : vector<8x10xf32>
    %cst_10 = arith.constant 0.000000e+00 : f32
    %38 = vector.broadcast %cst_10 : f32 to vector<8x10xf32>
    %39 = arith.maximumf %37, %38 : vector<8x10xf32>
    %c0_11 = arith.constant 0 : index
    %c0_12 = arith.constant 0 : index
    %40 = vector.load %arg4[%c0_11, %c0_12] : memref<8x896xf32, #tpu.memory_space<vmem>>, vector<1x896xf32>
    %c1_13 = arith.constant 1 : index
    %c0_14 = arith.constant 0 : index
    %41 = vector.load %arg4[%c1_13, %c0_14] : memref<8x896xf32, #tpu.memory_space<vmem>>, vector<1x896xf32>
    %c0_15 = arith.constant 0 : index
    %c0_16 = arith.constant 0 : index
    %42 = vector.load %arg2[%c0_15, %c0_16] : memref<10x896xf32, #tpu.memory_space<vmem>>, vector<10x896xf32>
    %cst_17 = arith.constant dense<0.000000e+00> : vector<8x896xf32>
    %43 = tpu.matmul %39, %42, %cst_17 {dimension_numbers = #tpu.dot_dimension_numbers<[1], [0], [0], [1], [0, 0, 1, 1], [], []>} : vector<8x10xf32>, vector<10x896xf32>, vector<8x896xf32> -> vector<8x896xf32>
    %cst_18 = arith.constant dense<0.000000e+00> : vector<896xf32>
    %44 = vector.multi_reduction <add>, %43, %cst_18 [0] : vector<8x896xf32> to vector<896xf32>
    %45 = vector.shape_cast %44 : vector<896xf32> to vector<1x896xf32>
    %cst_19 = arith.constant 8.000000e+00 : f32
    %46 = vector.broadcast %cst_19 : f32 to vector<1x896xf32>
    %47 = arith.divf %45, %46 : vector<1x896xf32>
    %48 = vector.broadcast %47 : vector<1x896xf32> to vector<8x896xf32>
    %49 = arith.subf %43, %48 : vector<8x896xf32>
    %50 = arith.mulf %49, %49 : vector<8x896xf32>
    %cst_20 = arith.constant dense<0.000000e+00> : vector<896xf32>
    %51 = vector.multi_reduction <add>, %50, %cst_20 [0] : vector<8x896xf32> to vector<896xf32>
    %52 = vector.shape_cast %51 : vector<896xf32> to vector<1x896xf32>
    %cst_21 = arith.constant 8.000000e+00 : f32
    %53 = vector.broadcast %cst_21 : f32 to vector<1x896xf32>
    %54 = arith.divf %52, %53 : vector<1x896xf32>
    %cst_22 = arith.constant 9.99999974E-6 : f32
    %55 = vector.broadcast %cst_22 : f32 to vector<1x896xf32>
    %56 = arith.addf %54, %55 : vector<1x896xf32>
    %57 = math.rsqrt %56 : vector<1x896xf32>
    %58 = vector.broadcast %57 : vector<1x896xf32> to vector<8x896xf32>
    %59 = arith.mulf %49, %58 : vector<8x896xf32>
    %60 = vector.broadcast %40 : vector<1x896xf32> to vector<8x896xf32>
    %61 = arith.mulf %59, %60 : vector<8x896xf32>
    %62 = vector.broadcast %41 : vector<1x896xf32> to vector<8x896xf32>
    %63 = arith.addf %61, %62 : vector<8x896xf32>
    %cst_23 = arith.constant 0.000000e+00 : f32
    %64 = vector.broadcast %cst_23 : f32 to vector<8x896xf32>
    %65 = arith.maximumf %63, %64 : vector<8x896xf32>
    %c4_24 = arith.constant 4 : index
    %c0_25 = arith.constant 0 : index
    %66 = vector.load %arg4[%c4_24, %c0_25] : memref<8x896xf32, #tpu.memory_space<vmem>>, vector<1x50xf32>
    %c0_26 = arith.constant 0 : index
    %c0_27 = arith.constant 0 : index
    %67 = vector.load %arg3[%c0_26, %c0_27] : memref<896x50xf32, #tpu.memory_space<vmem>>, vector<896x50xf32>
    %cst_28 = arith.constant dense<0.000000e+00> : vector<8x50xf32>
    %68 = tpu.matmul %65, %67, %cst_28 {dimension_numbers = #tpu.dot_dimension_numbers<[1], [0], [0], [1], [0, 0, 1, 1], [], []>} : vector<8x896xf32>, vector<896x50xf32>, vector<8x50xf32> -> vector<8x50xf32>
    %69 = vector.broadcast %66 : vector<1x50xf32> to vector<8x50xf32>
    %70 = arith.addf %68, %69 : vector<8x50xf32>
    %cst_29 = arith.constant 0.000000e+00 : f32
    %71 = vector.broadcast %cst_29 : f32 to vector<8x50xf32>
    %72 = arith.maximumf %70, %71 : vector<8x50xf32>
    %c5 = arith.constant 5 : index
    %c0_30 = arith.constant 0 : index
    %73 = vector.load %arg4[%c5, %c0_30] : memref<8x896xf32, #tpu.memory_space<vmem>>, vector<1x50xf32>
    %74 = vector.broadcast %73 : vector<1x50xf32> to vector<8x50xf32>
    %75 = arith.mulf %72, %74 : vector<8x50xf32>
    %cst_31 = arith.constant dense<0.000000e+00> : vector<8xf32>
    %76 = vector.multi_reduction <add>, %75, %cst_31 [1] : vector<8x50xf32> to vector<8xf32>
    %77 = vector.shape_cast %76 : vector<8xf32> to vector<8x1xf32>
    %78 = vector.broadcast %4 : f32 to vector<8x1xf32>
    %79 = arith.addf %77, %78 : vector<8x1xf32>
    %cst_32 = arith.constant 0.000000e+00 : f32
    %80 = vector.broadcast %cst_32 : f32 to vector<8x1xf32>
    %81 = arith.maximumf %79, %80 : vector<8x1xf32>
    %c0_33 = arith.constant 0 : index
    %c0_34 = arith.constant 0 : index
    %82 = vector.load %arg5[%c0_33, %c0_34] : memref<8x1xf32, #tpu.memory_space<vmem>>, vector<8x1xf32>
    tpu.vector_store %arg5[%c0_33, %c0_34], %81 {strides = array<i32>} : memref<8x1xf32, #tpu.memory_space<vmem>>, vector<8x1xf32>,
    return
  }
}

</mosaic_0001>

<llo_original>
// kernel: linear_regression_forward.1
$region0: #{linear_regression_forward.1}
  #allocation0 [shape = 'u32[]', space=smem, size = 0x4, offset = 0x4, fixed_abs, tag = 'smem constant byte address 0x4 - core index']
  #allocation1 [shape = 'u32[72,128]{1,0:T(1,128)}', space=vmem, size = 0x9000, scoped, tag = 'internal scratch']
  %s0 = inlined_call_operand.vmem [shape: f32[5], index: 0, kind: input, shape index: {}]
  %s1 = inlined_call_operand.vmem [shape: f32[8,1], index: 1, kind: input, shape index: {}]
  %s2 = inlined_call_operand.vmem [shape: f32[10,896], index: 2, kind: input, shape index: {}]
  %s3 = inlined_call_operand.vmem [shape: f32[896,50], index: 3, kind: input, shape index: {}]
  %s4 = inlined_call_operand.vmem [shape: f32[8,896], index: 4, kind: input, shape index: {}]
  %s5 = inlined_call_operand.vmem [shape: f32[8,1], index: 5, kind: output, shape index: {}]
  %s6 = sld [smem:[#allocation0]]
  $region34: #{linear_regression_forward.1} parent=0
    _
  %s8 = ssub.s32 1, %s6
  %s9 = scalar_select 0, %s8, %s6
  $region1: #{linear_regression_forward.1} parent=0
    #allocation2 [shape = 'u8[512]{0}', space=smem, size = 0x200, scoped, tag = 'input window, operand 0, single buffered']
    #allocation3 [shape = 's32[1]{0}', space=sflag, size = 0x4, scoped, tag = 'scoped memory for linear_regression_forward.1']
    %10 = vsyncpa [#allocation3], 0
    // Predicated region
    $region2: #{linear_regression_forward.1} parent=1 // pred_check
      _
    $region3: #{linear_regression_forward.1} parent=1 // pred_check_branch
      %12 = sbr.rel (0) target = $region5
    $region4: #{linear_regression_forward.1} parent=1 // pred_region
      %14 = vsyncadd [#allocation3], 0
      %s16 = sshll.u32 %s0, 4
      %s17 = int_to_ptr.vmem [resolvable:$true] %s16
      %19 = dma.vmem_to_smem %s17, 16, [#allocation2], [#allocation3]
    $region5: #{linear_regression_forward.1} parent=1 // pred_fallthru
      _
    // Predicated region
    $region6: #{linear_regression_forward.1} parent=1 // pred_check
      _
    $region7: #{linear_regression_forward.1} parent=1 // pred_check_branch
      %21 = sbr.rel (0) target = $region9
    $region8: #{linear_regression_forward.1} parent=1 // pred_region
      _
    $region9: #{linear_regression_forward.1} parent=1 // pred_fallthru
      _
    // Predicated region
    $region10: #{linear_regression_forward.1} parent=1 // pred_check
      _
    $region11: #{linear_regression_forward.1} parent=1 // pred_check_branch
      %23 = sbr.rel (0) target = $region13
    $region12: #{linear_regression_forward.1} parent=1 // pred_region
      _
    $region13: #{linear_regression_forward.1} parent=1 // pred_fallthru
      _
    // Predicated region
    $region14: #{linear_regression_forward.1} parent=1 // pred_check
      _
    $region15: #{linear_regression_forward.1} parent=1 // pred_check_branch
      %25 = sbr.rel (0) target = $region17
    $region16: #{linear_regression_forward.1} parent=1 // pred_region
      _
    $region17: #{linear_regression_forward.1} parent=1 // pred_fallthru
      _
    // Predicated region
    $region18: #{linear_regression_forward.1} parent=1 // pred_check
      _
    $region19: #{linear_regression_forward.1} parent=1 // pred_check_branch
      %27 = sbr.rel (0) target = $region21
    $region20: #{linear_regression_forward.1} parent=1 // pred_region
      _
    $region21: #{linear_regression_forward.1} parent=1 // pred_fallthru
      _
    // Predicated region
    $region22: #{linear_regression_forward.1} parent=1 // pred_check
      _
    $region23: #{linear_regression_forward.1} parent=1 // pred_check_branch
      %29 = sbr.rel (0) target = $region25
    $region24: #{linear_regression_forward.1} parent=1 // pred_region
      %31 = dma.done [#allocation3], 16
    $region25: #{linear_regression_forward.1} parent=1 // pred_fallthru
      _
    %32 = sfence
    %s33 = sld [smem:[#allocation2]]
    %s34 = sld [smem:[#allocation2 + $0x1]]
    %s35 = sld [smem:[#allocation2 + $0x2]]
    %s36 = sld [smem:[#allocation2 + $0x3]]
    %s37 = sld [smem:[#allocation2 + $0x4]]
    %v38 = vld [vmem:[%s1] sm:$0xff]
    %v39 = vstv %s33
    %v40 = vmul.f32 %v38, %v39
    %v41 = vstv %s34
    %v42 = vadd.f32 %v40, %v41
    %vm43 = vcmask 7168
    %v44 = vsel %vm43, %v42, 0.0
    %v45 = vrot.slane %v44, 4
    %v46 = vadd.f32 %v44, %v45
    %v47 = vrot.slane %v46, 2
    %v48 = vadd.f32 %v46, %v47
    %v49 = vrot.slane %v48, 1
    %v50 = vadd.f32 %v48, %v49
    %v51 = vrcp.pop 8.0
    %v52 = vmul.f32 8.0, %v51
    %v53 = vsub.f32 1.0, %v52
    %v54 = vmul.f32 %v51, %v53
    %v55 = vadd.f32 %v51, %v54
    %vm56 = vweird.f32 %v51
    %v57 = vsel %vm56, %v51, %v55
    %v58 = vmul.f32 %v50, %v57
    %v59 = vsub.f32 %v42, %v58
    %v60 = vmul.f32 %v59, %v59
    %v61 = vsel %vm43, %v60, 0.0
    %v62 = vrot.slane %v61, 4
    %v63 = vadd.f32 %v61, %v62
    %v64 = vrot.slane %v63, 2
    %v65 = vadd.f32 %v63, %v64
    %v66 = vrot.slane %v65, 1
    %v67 = vadd.f32 %v65, %v66
    %v68 = vmul.f32 %v67, %v57
    %v69 = vadd.f32 %v68, 1e-05
    %v70 = vrsqrt.pop %v69
    %v71 = vmul.f32 %v70, %v69
    %v72 = vmul.f32 %v71, %v70
    %v73 = vmul.f32 0.5, %v72
    %v74 = vsub.f32 1.5, %v73
    %v75 = vmul.f32 %v70, %v74
    %vm76 = vweird.f32 %v69
    %vm77 = vweird.f32 %v70
    %vm78 = vmor %vm76, %vm77
    %v79 = vsel %vm78, %v70, %v75
    %v80 = vmul.f32 %v59, %v79
    %v81 = vstv %s35
    %v82 = vmul.f32 %v80, %v81
    %v83 = vstv %s36
    %v84 = vadd.f32 %v82, %v83
    %v85 = vtanh.pop %v84
    %v86 = vld [vmem:[%s4 + $0x2] ss:$0 sm:$0xff]
    %v87 = vld [vmem:[%s4 + $0x3] ss:$0 sm:$0xff]
    %89 = vset.pattern.permute.xlu0 0
    %90 = vperm.xlu0 %89, %v85
    %v91 = vpop.permute.xlu0 %90
    %v93 = vmul.f32 %v91, %v86
    %v94 = vadd.f32 %v93, %v87
    %v95 = vmax.f32 %v94, 0.0
    %v96 = vld [vmem:[%s4] ss:$8 sm:$0xf]
    %v97 = vld [vmem:[%s4] ss:$8 sm:$0xf0]
    %v98 = vor.u32 %v96, %v97
    %s99 = scalar_lea.vmem %s4, 1
    %v100 = vld [vmem:[%s99] ss:$8 sm:$0xf]
    %v101 = vld [vmem:[%s99] ss:$8 sm:$0xf0]
    %v102 = vor.u32 %v100, %v101
    %v103 = vld [vmem:[%s2] sm:$0xff]
    %v104 = vld [vmem:[%s2 + $0x8] sm:$0xff]
    %v105 = vld [vmem:[%s2 + $0x10] sm:$0xff]
    %v106 = vld [vmem:[%s2 + $0x18] sm:$0xff]
    %v107 = vld [vmem:[%s2 + $0x20] sm:$0xff]
    %v108 = vld [vmem:[%s2 + $0x28] sm:$0xff]
    %v109 = vld [vmem:[%s2 + $0x30] sm:$0xff]
    %v110 = vld [vmem:[%s2 + $0x38] sm:$0x3]
    %v111 = vld [vmem:[%s2 + $0x40] sm:$0x3]
    %v112 = vld [vmem:[%s2 + $0x48] sm:$0x3]
    %v113 = vld [vmem:[%s2 + $0x50] sm:$0x3]
    %v114 = vld [vmem:[%s2 + $0x58] sm:$0x3]
    %v115 = vld [vmem:[%s2 + $0x60] sm:$0x3]
    %v116 = vld [vmem:[%s2 + $0x68] sm:$0x3]
    %vm117 = vcmask 80896
    %v119 = vsel %vm117, %v95, 0
    %vm121 = vcmask 1041408
    %v123 = vsel %vm121, %v110, 0
    %v126 = vsel %vm121, %v111, 0
    %v129 = vsel %vm121, %v112, 0
    %v132 = vsel %vm121, %v113, 0
    %v135 = vsel %vm121, %v114, 0
    %v138 = vsel %vm121, %v115, 0
    %v141 = vsel %vm121, %v116, 0
    %143 = vmatpush.msra.mxu0 0.0
    %144 = vmatpush.msra.mxu0 0.0
    %145 = vmatpush.msra.mxu0 0.0
    %146 = vmatpush.msra.mxu0 0.0
    %147 = vmatpush.msra.mxu0 0.0
    %148 = vmatpush.msra.mxu0 0.0
    %149 = vmatpush.msra.mxu0 0.0
    %150 = vmatpush.msra.mxu0 0.0
    %151 = vmatpush.msra.mxu0 0.0
    %152 = vmatpush.msra.mxu0 0.0
    %153 = vmatpush.msra.mxu0 0.0
    %154 = vmatpush.msra.mxu0 0.0
    %155 = vmatpush.msra.mxu0 0.0
    %156 = vmatpush.msra.mxu0 0.0
    %157 = vmatpush.msra.mxu0 %v123
    %158 = vmatpush.msra.mxu0 %v103
    %159 = vmatmul.f32.gmra.mxu0 %v119
    %v160 = vpop.f32.mrf.mxu0
    %v161 = vadd.f32 0.0, %v160
    %162 = vdwg.mxu0
    %163 = vmatpush.msra.mxu0 0.0
    %164 = vmatpush.msra.mxu0 0.0
    %165 = vmatpush.msra.mxu0 0.0
    %166 = vmatpush.msra.mxu0 0.0
    %167 = vmatpush.msra.mxu0 0.0
    %168 = vmatpush.msra.mxu0 0.0
    %169 = vmatpush.msra.mxu0 0.0
    %170 = vmatpush.msra.mxu0 0.0
    %171 = vmatpush.msra.mxu0 0.0
    %172 = vmatpush.msra.mxu0 0.0
    %173 = vmatpush.msra.mxu0 0.0
    %174 = vmatpush.msra.mxu0 0.0
    %175 = vmatpush.msra.mxu0 0.0
    %176 = vmatpush.msra.mxu0 0.0
    %177 = vmatpush.msra.mxu0 %v126
    %178 = vmatpush.msra.mxu0 %v104
    %179 = vmatmul.f32.gmra.mxu0 %v119
    %v180 = vpop.f32.mrf.mxu0
    %v181 = vadd.f32 0.0, %v180
    %182 = vdwg.mxu0
    %183 = vmatpush.msra.mxu0 0.0
    %184 = vmatpush.msra.mxu0 0.0
    %185 = vmatpush.msra.mxu0 0.0
    %186 = vmatpush.msra.mxu0 0.0
    %187 = vmatpush.msra.mxu0 0.0
    %188 = vmatpush.msra.mxu0 0.0
    %189 = vmatpush.msra.mxu0 0.0
    %190 = vmatpush.msra.mxu0 0.0
    %191 = vmatpush.msra.mxu0 0.0
    %192 = vmatpush.msra.mxu0 0.0
    %193 = vmatpush.msra.mxu0 0.0
    %194 = vmatpush.msra.mxu0 0.0
    %195 = vmatpush.msra.mxu0 0.0
    %196 = vmatpush.msra.mxu0 0.0
    %197 = vmatpush.msra.mxu0 %v129
    %198 = vmatpush.msra.mxu0 %v105
    %199 = vmatmul.f32.gmra.mxu0 %v119
    %v200 = vpop.f32.mrf.mxu0
    %v201 = vadd.f32 0.0, %v200
    %202 = vdwg.mxu0
    %203 = vmatpush.msra.mxu0 0.0
    %204 = vmatpush.msra.mxu0 0.0
    %205 = vmatpush.msra.mxu0 0.0
    %206 = vmatpush.msra.mxu0 0.0
    %207 = vmatpush.msra.mxu0 0.0
    %208 = vmatpush.msra.mxu0 0.0
    %209 = vmatpush.msra.mxu0 0.0
    %210 = vmatpush.msra.mxu0 0.0
    %211 = vmatpush.msra.mxu0 0.0
    %212 = vmatpush.msra.mxu0 0.0
    %213 = vmatpush.msra.mxu0 0.0
    %214 = vmatpush.msra.mxu0 0.0
    %215 = vmatpush.msra.mxu0 0.0
    %216 = vmatpush.msra.mxu0 0.0
    %217 = vmatpush.msra.mxu0 %v132
    %218 = vmatpush.msra.mxu0 %v106
    %219 = vmatmul.f32.gmra.mxu0 %v119
    %v220 = vpop.f32.mrf.mxu0
    %v221 = vadd.f32 0.0, %v220
    %222 = vdwg.mxu0
    %223 = vmatpush.msra.mxu0 0.0
    %224 = vmatpush.msra.mxu0 0.0
    %225 = vmatpush.msra.mxu0 0.0
    %226 = vmatpush.msra.mxu0 0.0
    %227 = vmatpush.msra.mxu0 0.0
    %228 = vmatpush.msra.mxu0 0.0
    %229 = vmatpush.msra.mxu0 0.0
    %230 = vmatpush.msra.mxu0 0.0
    %231 = vmatpush.msra.mxu0 0.0
    %232 = vmatpush.msra.mxu0 0.0
    %233 = vmatpush.msra.mxu0 0.0
    %234 = vmatpush.msra.mxu0 0.0
    %235 = vmatpush.msra.mxu0 0.0
    %236 = vmatpush.msra.mxu0 0.0
    %237 = vmatpush.msra.mxu0 %v135
    %238 = vmatpush.msra.mxu0 %v107
    %239 = vmatmul.f32.gmra.mxu0 %v119
    %v240 = vpop.f32.mrf.mxu0
    %v241 = vadd.f32 0.0, %v240
    %242 = vdwg.mxu0
    %243 = vmatpush.msra.mxu0 0.0
    %244 = vmatpush.msra.mxu0 0.0
    %245 = vmatpush.msra.mxu0 0.0
    %246 = vmatpush.msra.mxu0 0.0
    %247 = vmatpush.msra.mxu0 0.0
    %248 = vmatpush.msra.mxu0 0.0
    %249 = vmatpush.msra.mxu0 0.0
    %250 = vmatpush.msra.mxu0 0.0
    %251 = vmatpush.msra.mxu0 0.0
    %252 = vmatpush.msra.mxu0 0.0
    %253 = vmatpush.msra.mxu0 0.0
    %254 = vmatpush.msra.mxu0 0.0
    %255 = vmatpush.msra.mxu0 0.0
    %256 = vmatpush.msra.mxu0 0.0
    %257 = vmatpush.msra.mxu0 %v138
    %258 = vmatpush.msra.mxu0 %v108
    %259 = vmatmul.f32.gmra.mxu0 %v119
    %v260 = vpop.f32.mrf.mxu0
    %v261 = vadd.f32 0.0, %v260
    %262 = vdwg.mxu0
    %263 = vmatpush.msra.mxu0 0.0
    %264 = vmatpush.msra.mxu0 0.0
    %265 = vmatpush.msra.mxu0 0.0
    %266 = vmatpush.msra.mxu0 0.0
    %267 = vmatpush.msra.mxu0 0.0
    %268 = vmatpush.msra.mxu0 0.0
    %269 = vmatpush.msra.mxu0 0.0
    %270 = vmatpush.msra.mxu0 0.0
    %271 = vmatpush.msra.mxu0 0.0
    %272 = vmatpush.msra.mxu0 0.0
    %273 = vmatpush.msra.mxu0 0.0
    %274 = vmatpush.msra.mxu0 0.0
    %275 = vmatpush.msra.mxu0 0.0
    %276 = vmatpush.msra.mxu0 0.0
    %277 = vmatpush.msra.mxu0 %v141
    %278 = vmatpush.msra.mxu0 %v109
    %279 = vmatmul.f32.gmra.mxu0 %v119
    %v280 = vpop.f32.mrf.mxu0
    %v281 = vadd.f32 0.0, %v280
    %282 = vdwg.mxu0
    %v283 = vrot.slane %v161, 4
    %v284 = vadd.f32 %v161, %v283
    %v285 = vrot.slane %v284, 2
    %v286 = vadd.f32 %v284, %v285
    %v287 = vrot.slane %v286, 1
    %v288 = vadd.f32 %v286, %v287
    %v289 = vrot.slane %v181, 4
    %v290 = vadd.f32 %v181, %v289
    %v291 = vrot.slane %v290, 2
    %v292 = vadd.f32 %v290, %v291
    %v293 = vrot.slane %v292, 1
    %v294 = vadd.f32 %v292, %v293
    %v295 = vrot.slane %v201, 4
    %v296 = vadd.f32 %v201, %v295
    %v297 = vrot.slane %v296, 2
    %v298 = vadd.f32 %v296, %v297
    %v299 = vrot.slane %v298, 1
    %v300 = vadd.f32 %v298, %v299
    %v301 = vrot.slane %v221, 4
    %v302 = vadd.f32 %v221, %v301
    %v303 = vrot.slane %v302, 2
    %v304 = vadd.f32 %v302, %v303
    %v305 = vrot.slane %v304, 1
    %v306 = vadd.f32 %v304, %v305
    %v307 = vrot.slane %v241, 4
    %v308 = vadd.f32 %v241, %v307
    %v309 = vrot.slane %v308, 2
    %v310 = vadd.f32 %v308, %v309
    %v311 = vrot.slane %v310, 1
    %v312 = vadd.f32 %v310, %v311
    %v313 = vrot.slane %v261, 4
    %v314 = vadd.f32 %v261, %v313
    %v315 = vrot.slane %v314, 2
    %v316 = vadd.f32 %v314, %v315
    %v317 = vrot.slane %v316, 1
    %v318 = vadd.f32 %v316, %v317
    %v319 = vrot.slane %v281, 4
    %v320 = vadd.f32 %v281, %v319
    %v321 = vrot.slane %v320, 2
    %v322 = vadd.f32 %v320, %v321
    %v323 = vrot.slane %v322, 1
    %v324 = vadd.f32 %v322, %v323
    %v325 = vmul.f32 %v288, %v57
    %v326 = vmul.f32 %v294, %v57
    %v327 = vmul.f32 %v300, %v57
    %v328 = vmul.f32 %v306, %v57
    %v329 = vmul.f32 %v312, %v57
    %v330 = vmul.f32 %v318, %v57
    %v331 = vmul.f32 %v324, %v57
    %v332 = vsub.f32 %v161, %v325
    %v333 = vsub.f32 %v181, %v326
    %v334 = vsub.f32 %v201, %v327
    %v335 = vsub.f32 %v221, %v328
    %v336 = vsub.f32 %v241, %v329
    %v337 = vsub.f32 %v261, %v330
    %v338 = vsub.f32 %v281, %v331
    %v339 = vmul.f32 %v332, %v332
    %v340 = vmul.f32 %v333, %v333
    %v341 = vmul.f32 %v334, %v334
    %v342 = vmul.f32 %v335, %v335
    %v343 = vmul.f32 %v336, %v336
    %v344 = vmul.f32 %v337, %v337
    %v345 = vmul.f32 %v338, %v338
    %v346 = vrot.slane %v339, 4
    %v347 = vadd.f32 %v339, %v346
    %v348 = vrot.slane %v347, 2
    %v349 = vadd.f32 %v347, %v348
    %v350 = vrot.slane %v349, 1
    %v351 = vadd.f32 %v349, %v350
    %v352 = vrot.slane %v340, 4
    %v353 = vadd.f32 %v340, %v352
    %v354 = vrot.slane %v353, 2
    %v355 = vadd.f32 %v353, %v354
    %v356 = vrot.slane %v355, 1
    %v357 = vadd.f32 %v355, %v356
    %v358 = vrot.slane %v341, 4
    %v359 = vadd.f32 %v341, %v358
    %v360 = vrot.slane %v359, 2
    %v361 = vadd.f32 %v359, %v360
    %v362 = vrot.slane %v361, 1
    %v363 = vadd.f32 %v361, %v362
    %v364 = vrot.slane %v342, 4
    %v365 = vadd.f32 %v342, %v364
    %v366 = vrot.slane %v365, 2
    %v367 = vadd.f32 %v365, %v366
    %v368 = vrot.slane %v367, 1
    %v369 = vadd.f32 %v367, %v368
    %v370 = vrot.slane %v343, 4
    %v371 = vadd.f32 %v343, %v370
    %v372 = vrot.slane %v371, 2
    %v373 = vadd.f32 %v371, %v372
    %v374 = vrot.slane %v373, 1
    %v375 = vadd.f32 %v373, %v374
    %v376 = vrot.slane %v344, 4
    %v377 = vadd.f32 %v344, %v376
    %v378 = vrot.slane %v377, 2
    %v379 = vadd.f32 %v377, %v378
    %v380 = vrot.slane %v379, 1
    %v381 = vadd.f32 %v379, %v380
    %v382 = vrot.slane %v345, 4
    %v383 = vadd.f32 %v345, %v382
    %v384 = vrot.slane %v383, 2
    %v385 = vadd.f32 %v383, %v384
    %v386 = vrot.slane %v385, 1
    %v387 = vadd.f32 %v385, %v386
    %v388 = vmul.f32 %v351, %v57
    %v389 = vmul.f32 %v357, %v57
    %v390 = vmul.f32 %v363, %v57
    %v391 = vmul.f32 %v369, %v57
    %v392 = vmul.f32 %v375, %v57
    %v393 = vmul.f32 %v381, %v57
    %v394 = vmul.f32 %v387, %v57
    %v395 = vadd.f32 %v388, 1e-05
    %v396 = vadd.f32 %v389, 1e-05
    %v397 = vadd.f32 %v390, 1e-05
    %v398 = vadd.f32 %v391, 1e-05
    %v399 = vadd.f32 %v392, 1e-05
    %v400 = vadd.f32 %v393, 1e-05
    %v401 = vadd.f32 %v394, 1e-05
    %v402 = vrsqrt.pop %v395
    %v403 = vmul.f32 %v402, %v395
    %v404 = vmul.f32 %v403, %v402
    %v405 = vmul.f32 0.5, %v404
    %v406 = vsub.f32 1.5, %v405
    %v407 = vmul.f32 %v402, %v406
    %vm408 = vweird.f32 %v395
    %vm409 = vweird.f32 %v402
    %vm410 = vmor %vm408, %vm409
    %v411 = vsel %vm410, %v402, %v407
    %v412 = vrsqrt.pop %v396
    %v413 = vmul.f32 %v412, %v396
    %v414 = vmul.f32 %v413, %v412
    %v415 = vmul.f32 0.5, %v414
    %v416 = vsub.f32 1.5, %v415
    %v417 = vmul.f32 %v412, %v416
    %vm418 = vweird.f32 %v396
    %vm419 = vweird.f32 %v412
    %vm420 = vmor %vm418, %vm419
    %v421 = vsel %vm420, %v412, %v417
    %v422 = vrsqrt.pop %v397
    %v423 = vmul.f32 %v422, %v397
    %v424 = vmul.f32 %v423, %v422
    %v425 = vmul.f32 0.5, %v424
    %v426 = vsub.f32 1.5, %v425
    %v427 = vmul.f32 %v422, %v426
    %vm428 = vweird.f32 %v397
    %vm429 = vweird.f32 %v422
    %vm430 = vmor %vm428, %vm429
    %v431 = vsel %vm430, %v422, %v427
    %v432 = vrsqrt.pop %v398
    %v433 = vmul.f32 %v432, %v398
    %v434 = vmul.f32 %v433, %v432
    %v435 = vmul.f32 0.5, %v434
    %v436 = vsub.f32 1.5, %v435
    %v437 = vmul.f32 %v432, %v436
    %vm438 = vweird.f32 %v398
    %vm439 = vweird.f32 %v432
    %vm440 = vmor %vm438, %vm439
    %v441 = vsel %vm440, %v432, %v437
    %v442 = vrsqrt.pop %v399
    %v443 = vmul.f32 %v442, %v399
    %v444 = vmul.f32 %v443, %v442
    %v445 = vmul.f32 0.5, %v444
    %v446 = vsub.f32 1.5, %v445
    %v447 = vmul.f32 %v442, %v446
    %vm448 = vweird.f32 %v399
    %vm449 = vweird.f32 %v442
    %vm450 = vmor %vm448, %vm449
    %v451 = vsel %vm450, %v442, %v447
    %v452 = vrsqrt.pop %v400
    %v453 = vmul.f32 %v452, %v400
    %v454 = vmul.f32 %v453, %v452
    %v455 = vmul.f32 0.5, %v454
    %v456 = vsub.f32 1.5, %v455
    %v457 = vmul.f32 %v452, %v456
    %vm458 = vweird.f32 %v400
    %vm459 = vweird.f32 %v452
    %vm460 = vmor %vm458, %vm459
    %v461 = vsel %vm460, %v452, %v457
    %v462 = vrsqrt.pop %v401
    %v463 = vmul.f32 %v462, %v401
    %v464 = vmul.f32 %v463, %v462
    %v465 = vmul.f32 0.5, %v464
    %v466 = vsub.f32 1.5, %v465
    %v467 = vmul.f32 %v462, %v466
    %vm468 = vweird.f32 %v401
    %vm469 = vweird.f32 %v462
    %vm470 = vmor %vm468, %vm469
    %v471 = vsel %vm470, %v462, %v467
    %v472 = vmul.f32 %v332, %v411
    %v473 = vmul.f32 %v333, %v421
    %v474 = vmul.f32 %v334, %v431
    %v475 = vmul.f32 %v335, %v441
    %v476 = vmul.f32 %v336, %v451
    %v477 = vmul.f32 %v337, %v461
    %v478 = vmul.f32 %v338, %v471
    %v480 = vperm.slane %v98, 0
    %v481 = vperm.slane %v98, 1
    %v482 = vperm.slane %v98, 2
    %v483 = vperm.slane %v98, 3
    %v484 = vperm.slane %v98, 4
    %v485 = vperm.slane %v98, 5
    %v486 = vperm.slane %v98, 6
    %v494 = vmul.f32 %v472, %v480
    %v495 = vmul.f32 %v473, %v481
    %v496 = vmul.f32 %v474, %v482
    %v497 = vmul.f32 %v475, %v483
    %v498 = vmul.f32 %v476, %v484
    %v499 = vmul.f32 %v477, %v485
    %v500 = vmul.f32 %v478, %v486
    %v502 = vperm.slane %v102, 0
    %v503 = vperm.slane %v102, 1
    %v504 = vperm.slane %v102, 2
    %v505 = vperm.slane %v102, 3
    %v506 = vperm.slane %v102, 4
    %v507 = vperm.slane %v102, 5
    %v508 = vperm.slane %v102, 6
    %v516 = vadd.f32 %v494, %v502
    %v517 = vadd.f32 %v495, %v503
    %v518 = vadd.f32 %v496, %v504
    %v519 = vadd.f32 %v497, %v505
    %v520 = vadd.f32 %v498, %v506
    %v521 = vadd.f32 %v499, %v507
    %v522 = vadd.f32 %v500, %v508
    %v523 = vmax.f32 %v516, 0.0
    %v524 = vmax.f32 %v517, 0.0
    %v525 = vmax.f32 %v518, 0.0
    %v526 = vmax.f32 %v519, 0.0
    %v527 = vmax.f32 %v520, 0.0
    %v528 = vmax.f32 %v521, 0.0
    %v529 = vmax.f32 %v522, 0.0
    %v530 = vld [vmem:[%s4 + $0x4] ss:$0 sm:$0xff]
    %v531 = vld [vmem:[%s3] sm:$0xff]
    %v532 = vld [vmem:[%s3 + $0x8] sm:$0xff]
    %v533 = vld [vmem:[%s3 + $0x10] sm:$0xff]
    %v534 = vld [vmem:[%s3 + $0x18] sm:$0xff]
    %v535 = vld [vmem:[%s3 + $0x20] sm:$0xff]
    %v536 = vld [vmem:[%s3 + $0x28] sm:$0xff]
    %v537 = vld [vmem:[%s3 + $0x30] sm:$0xff]
    %v538 = vld [vmem:[%s3 + $0x38] sm:$0xff]
    %v539 = vld [vmem:[%s3 + $0x40] sm:$0xff]
    %v540 = vld [vmem:[%s3 + $0x48] sm:$0xff]
    %v541 = vld [vmem:[%s3 + $0x50] sm:$0xff]
    %v542 = vld [vmem:[%s3 + $0x58] sm:$0xff]
    %v543 = vld [vmem:[%s3 + $0x60] sm:$0xff]
    %v544 = vld [vmem:[%s3 + $0x68] sm:$0xff]
    %v545 = vld [vmem:[%s3 + $0x70] sm:$0xff]
    %v546 = vld [vmem:[%s3 + $0x78] sm:$0xff]
    %v547 = vld [vmem:[%s3 + $0x80] sm:$0xff]
    %v548 = vld [vmem:[%s3 + $0x88] sm:$0xff]
    %v549 = vld [vmem:[%s3 + $0x90] sm:$0xff]
    %v550 = vld [vmem:[%s3 + $0x98] sm:$0xff]
    %v551 = vld [vmem:[%s3 + $0xa0] sm:$0xff]
    %v552 = vld [vmem:[%s3 + $0xa8] sm:$0xff]
    %v553 = vld [vmem:[%s3 + $0xb0] sm:$0xff]
    %v554 = vld [vmem:[%s3 + $0xb8] sm:$0xff]
    %v555 = vld [vmem:[%s3 + $0xc0] sm:$0xff]
    %v556 = vld [vmem:[%s3 + $0xc8] sm:$0xff]
    %v557 = vld [vmem:[%s3 + $0xd0] sm:$0xff]
    %v558 = vld [vmem:[%s3 + $0xd8] sm:$0xff]
    %v559 = vld [vmem:[%s3 + $0xe0] sm:$0xff]
    %v560 = vld [vmem:[%s3 + $0xe8] sm:$0xff]
    %v561 = vld [vmem:[%s3 + $0xf0] sm:$0xff]
    %v562 = vld [vmem:[%s3 + $0xf8] sm:$0xff]
    %v563 = vld [vmem:[%s3 + $0x100] sm:$0xff]
    %v564 = vld [vmem:[%s3 + $0x108] sm:$0xff]
    %v565 = vld [vmem:[%s3 + $0x110] sm:$0xff]
    %v566 = vld [vmem:[%s3 + $0x118] sm:$0xff]
    %v567 = vld [vmem:[%s3 + $0x120] sm:$0xff]
    %v568 = vld [vmem:[%s3 + $0x128] sm:$0xff]
    %v569 = vld [vmem:[%s3 + $0x130] sm:$0xff]
    %v570 = vld [vmem:[%s3 + $0x138] sm:$0xff]
    %v571 = vld [vmem:[%s3 + $0x140] sm:$0xff]
    %v572 = vld [vmem:[%s3 + $0x148] sm:$0xff]
    %v573 = vld [vmem:[%s3 + $0x150] sm:$0xff]
    %v574 = vld [vmem:[%s3 + $0x158] sm:$0xff]
    %v575 = vld [vmem:[%s3 + $0x160] sm:$0xff]
    %v576 = vld [vmem:[%s3 + $0x168] sm:$0xff]
    %v577 = vld [vmem:[%s3 + $0x170] sm:$0xff]
    %v578 = vld [vmem:[%s3 + $0x178] sm:$0xff]
    %v579 = vld [vmem:[%s3 + $0x180] sm:$0xff]
    %v580 = vld [vmem:[%s3 + $0x188] sm:$0xff]
    %v581 = vld [vmem:[%s3 + $0x190] sm:$0xff]
    %v582 = vld [vmem:[%s3 + $0x198] sm:$0xff]
    %v583 = vld [vmem:[%s3 + $0x1a0] sm:$0xff]
    %v584 = vld [vmem:[%s3 + $0x1a8] sm:$0xff]
    %v585 = vld [vmem:[%s3 + $0x1b0] sm:$0xff]
    %v586 = vld [vmem:[%s3 + $0x1b8] sm:$0xff]
    %v587 = vld [vmem:[%s3 + $0x1c0] sm:$0xff]
    %v588 = vld [vmem:[%s3 + $0x1c8] sm:$0xff]
    %v589 = vld [vmem:[%s3 + $0x1d0] sm:$0xff]
    %v590 = vld [vmem:[%s3 + $0x1d8] sm:$0xff]
    %v591 = vld [vmem:[%s3 + $0x1e0] sm:$0xff]
    %v592 = vld [vmem:[%s3 + $0x1e8] sm:$0xff]
    %v593 = vld [vmem:[%s3 + $0x1f0] sm:$0xff]
    %v594 = vld [vmem:[%s3 + $0x1f8] sm:$0xff]
    %v595 = vld [vmem:[%s3 + $0x200] sm:$0xff]
    %v596 = vld [vmem:[%s3 + $0x208] sm:$0xff]
    %v597 = vld [vmem:[%s3 + $0x210] sm:$0xff]
    %v598 = vld [vmem:[%s3 + $0x218] sm:$0xff]
    %v599 = vld [vmem:[%s3 + $0x220] sm:$0xff]
    %v600 = vld [vmem:[%s3 + $0x228] sm:$0xff]
    %v601 = vld [vmem:[%s3 + $0x230] sm:$0xff]
    %v602 = vld [vmem:[%s3 + $0x238] sm:$0xff]
    %v603 = vld [vmem:[%s3 + $0x240] sm:$0xff]
    %v604 = vld [vmem:[%s3 + $0x248] sm:$0xff]
    %v605 = vld [vmem:[%s3 + $0x250] sm:$0xff]
    %v606 = vld [vmem:[%s3 + $0x258] sm:$0xff]
    %v607 = vld [vmem:[%s3 + $0x260] sm:$0xff]
    %v608 = vld [vmem:[%s3 + $0x268] sm:$0xff]
    %v609 = vld [vmem:[%s3 + $0x270] sm:$0xff]
    %v610 = vld [vmem:[%s3 + $0x278] sm:$0xff]
    %v611 = vld [vmem:[%s3 + $0x280] sm:$0xff]
    %v612 = vld [vmem:[%s3 + $0x288] sm:$0xff]
    %v613 = vld [vmem:[%s3 + $0x290] sm:$0xff]
    %v614 = vld [vmem:[%s3 + $0x298] sm:$0xff]
    %v615 = vld [vmem:[%s3 + $0x2a0] sm:$0xff]
    %v616 = vld [vmem:[%s3 + $0x2a8] sm:$0xff]
    %v617 = vld [vmem:[%s3 + $0x2b0] sm:$0xff]
    %v618 = vld [vmem:[%s3 + $0x2b8] sm:$0xff]
    %v619 = vld [vmem:[%s3 + $0x2c0] sm:$0xff]
    %v620 = vld [vmem:[%s3 + $0x2c8] sm:$0xff]
    %v621 = vld [vmem:[%s3 + $0x2d0] sm:$0xff]
    %v622 = vld [vmem:[%s3 + $0x2d8] sm:$0xff]
    %v623 = vld [vmem:[%s3 + $0x2e0] sm:$0xff]
    %v624 = vld [vmem:[%s3 + $0x2e8] sm:$0xff]
    %v625 = vld [vmem:[%s3 + $0x2f0] sm:$0xff]
    %v626 = vld [vmem:[%s3 + $0x2f8] sm:$0xff]
    %v627 = vld [vmem:[%s3 + $0x300] sm:$0xff]
    %v628 = vld [vmem:[%s3 + $0x308] sm:$0xff]
    %v629 = vld [vmem:[%s3 + $0x310] sm:$0xff]
    %v630 = vld [vmem:[%s3 + $0x318] sm:$0xff]
    %v631 = vld [vmem:[%s3 + $0x320] sm:$0xff]
    %v632 = vld [vmem:[%s3 + $0x328] sm:$0xff]
    %v633 = vld [vmem:[%s3 + $0x330] sm:$0xff]
    %v634 = vld [vmem:[%s3 + $0x338] sm:$0xff]
    %v635 = vld [vmem:[%s3 + $0x340] sm:$0xff]
    %v636 = vld [vmem:[%s3 + $0x348] sm:$0xff]
    %v637 = vld [vmem:[%s3 + $0x350] sm:$0xff]
    %v638 = vld [vmem:[%s3 + $0x358] sm:$0xff]
    %v639 = vld [vmem:[%s3 + $0x360] sm:$0xff]
    %v640 = vld [vmem:[%s3 + $0x368] sm:$0xff]
    %v641 = vld [vmem:[%s3 + $0x370] sm:$0xff]
    %v642 = vld [vmem:[%s3 + $0x378] sm:$0xff]
    %643 = vmatpush.msra.mxu0 %v546
    %644 = vmatpush.msra.mxu0 %v545
    %645 = vmatpush.msra.mxu0 %v544
    %646 = vmatpush.msra.mxu0 %v543
    %647 = vmatpush.msra.mxu0 %v542
    %648 = vmatpush.msra.mxu0 %v541
    %649 = vmatpush.msra.mxu0 %v540
    %650 = vmatpush.msra.mxu0 %v539
    %651 = vmatpush.msra.mxu0 %v538
    %652 = vmatpush.msra.mxu0 %v537
    %653 = vmatpush.msra.mxu0 %v536
    %654 = vmatpush.msra.mxu0 %v535
    %655 = vmatpush.msra.mxu0 %v534
    %656 = vmatpush.msra.mxu0 %v533
    %657 = vmatpush.msra.mxu0 %v532
    %658 = vmatpush.msra.mxu0 %v531
    %659 = vmatmul.f32.gmra.mxu0 %v523
    %v660 = vpop.f32.mrf.mxu0
    %v661 = vadd.f32 %v530, %v660
    %662 = vdwg.mxu0
    %663 = vmatpush.msra.mxu0 %v562
    %664 = vmatpush.msra.mxu0 %v561
    %665 = vmatpush.msra.mxu0 %v560
    %666 = vmatpush.msra.mxu0 %v559
    %667 = vmatpush.msra.mxu0 %v558
    %668 = vmatpush.msra.mxu0 %v557
    %669 = vmatpush.msra.mxu0 %v556
    %670 = vmatpush.msra.mxu0 %v555
    %671 = vmatpush.msra.mxu0 %v554
    %672 = vmatpush.msra.mxu0 %v553
    %673 = vmatpush.msra.mxu0 %v552
    %674 = vmatpush.msra.mxu0 %v551
    %675 = vmatpush.msra.mxu0 %v550
    %676 = vmatpush.msra.mxu0 %v549
    %677 = vmatpush.msra.mxu0 %v548
    %678 = vmatpush.msra.mxu0 %v547
    %679 = vmatmul.f32.gmra.mxu0 %v524
    %v680 = vpop.f32.mrf.mxu0
    %v681 = vadd.f32 %v661, %v680
    %682 = vdwg.mxu0
    %683 = vmatpush.msra.mxu0 %v578
    %684 = vmatpush.msra.mxu0 %v577
    %685 = vmatpush.msra.mxu0 %v576
    %686 = vmatpush.msra.mxu0 %v575
    %687 = vmatpush.msra.mxu0 %v574
    %688 = vmatpush.msra.mxu0 %v573
    %689 = vmatpush.msra.mxu0 %v572
    %690 = vmatpush.msra.mxu0 %v571
    %691 = vmatpush.msra.mxu0 %v570
    %692 = vmatpush.msra.mxu0 %v569
    %693 = vmatpush.msra.mxu0 %v568
    %694 = vmatpush.msra.mxu0 %v567
    %695 = vmatpush.msra.mxu0 %v566
    %696 = vmatpush.msra.mxu0 %v565
    %697 = vmatpush.msra.mxu0 %v564
    %698 = vmatpush.msra.mxu0 %v563
    %699 = vmatmul.f32.gmra.mxu0 %v525
    %v700 = vpop.f32.mrf.mxu0
    %v701 = vadd.f32 %v681, %v700
    %702 = vdwg.mxu0
    %703 = vmatpush.msra.mxu0 %v594
    %704 = vmatpush.msra.mxu0 %v593
    %705 = vmatpush.msra.mxu0 %v592
    %706 = vmatpush.msra.mxu0 %v591
    %707 = vmatpush.msra.mxu0 %v590
    %708 = vmatpush.msra.mxu0 %v589
    %709 = vmatpush.msra.mxu0 %v588
    %710 = vmatpush.msra.mxu0 %v587
    %711 = vmatpush.msra.mxu0 %v586
    %712 = vmatpush.msra.mxu0 %v585
    %713 = vmatpush.msra.mxu0 %v584
    %714 = vmatpush.msra.mxu0 %v583
    %715 = vmatpush.msra.mxu0 %v582
    %716 = vmatpush.msra.mxu0 %v581
    %717 = vmatpush.msra.mxu0 %v580
    %718 = vmatpush.msra.mxu0 %v579
    %719 = vmatmul.f32.gmra.mxu0 %v526
    %v720 = vpop.f32.mrf.mxu0
    %v721 = vadd.f32 %v701, %v720
    %722 = vdwg.mxu0
    %723 = vmatpush.msra.mxu0 %v610
    %724 = vmatpush.msra.mxu0 %v609
    %725 = vmatpush.msra.mxu0 %v608
    %726 = vmatpush.msra.mxu0 %v607
    %727 = vmatpush.msra.mxu0 %v606
    %728 = vmatpush.msra.mxu0 %v605
    %729 = vmatpush.msra.mxu0 %v604
    %730 = vmatpush.msra.mxu0 %v603
    %731 = vmatpush.msra.mxu0 %v602
    %732 = vmatpush.msra.mxu0 %v601
    %733 = vmatpush.msra.mxu0 %v600
    %734 = vmatpush.msra.mxu0 %v599
    %735 = vmatpush.msra.mxu0 %v598
    %736 = vmatpush.msra.mxu0 %v597
    %737 = vmatpush.msra.mxu0 %v596
    %738 = vmatpush.msra.mxu0 %v595
    %739 = vmatmul.f32.gmra.mxu0 %v527
    %v740 = vpop.f32.mrf.mxu0
    %v741 = vadd.f32 %v721, %v740
    %742 = vdwg.mxu0
    %743 = vmatpush.msra.mxu0 %v626
    %744 = vmatpush.msra.mxu0 %v625
    %745 = vmatpush.msra.mxu0 %v624
    %746 = vmatpush.msra.mxu0 %v623
    %747 = vmatpush.msra.mxu0 %v622
    %748 = vmatpush.msra.mxu0 %v621
    %749 = vmatpush.msra.mxu0 %v620
    %750 = vmatpush.msra.mxu0 %v619
    %751 = vmatpush.msra.mxu0 %v618
    %752 = vmatpush.msra.mxu0 %v617
    %753 = vmatpush.msra.mxu0 %v616
    %754 = vmatpush.msra.mxu0 %v615
    %755 = vmatpush.msra.mxu0 %v614
    %756 = vmatpush.msra.mxu0 %v613
    %757 = vmatpush.msra.mxu0 %v612
    %758 = vmatpush.msra.mxu0 %v611
    %759 = vmatmul.f32.gmra.mxu0 %v528
    %v760 = vpop.f32.mrf.mxu0
    %v761 = vadd.f32 %v741, %v760
    %762 = vdwg.mxu0
    %763 = vmatpush.msra.mxu0 %v642
    %764 = vmatpush.msra.mxu0 %v641
    %765 = vmatpush.msra.mxu0 %v640
    %766 = vmatpush.msra.mxu0 %v639
    %767 = vmatpush.msra.mxu0 %v638
    %768 = vmatpush.msra.mxu0 %v637
    %769 = vmatpush.msra.mxu0 %v636
    %770 = vmatpush.msra.mxu0 %v635
    %771 = vmatpush.msra.mxu0 %v634
    %772 = vmatpush.msra.mxu0 %v633
    %773 = vmatpush.msra.mxu0 %v632
    %774 = vmatpush.msra.mxu0 %v631
    %775 = vmatpush.msra.mxu0 %v630
    %776 = vmatpush.msra.mxu0 %v629
    %777 = vmatpush.msra.mxu0 %v628
    %778 = vmatpush.msra.mxu0 %v627
    %779 = vmatmul.f32.gmra.mxu0 %v529
    %v780 = vpop.f32.mrf.mxu0
    %v781 = vadd.f32 %v761, %v780
    %782 = vdwg.mxu0
    %v783 = vmax.f32 %v781, 0.0
    %v784 = vld [vmem:[%s4 + $0x5] ss:$0 sm:$0xff]
    %v785 = vmul.f32 %v783, %v784
    %vm786 = vcmask 408576
    %v787 = vsel %vm786, %v785, 0.0
    %788 = vadd.xlane.f32.xlu0 %v787
    %v789 = vpop.xlane.xlu0 %788
    %v790 = vstv %s37
    %v791 = vadd.f32 %v789, %v790
    %v792 = vmax.f32 %v791, 0.0
    %793 = vst.msk [vmem:[%s5] sm:$0xff] %vm43, %v792
    // Predicated region
    $region26: #{linear_regression_forward.1} parent=1 // pred_check
      _
    $region27: #{linear_regression_forward.1} parent=1 // pred_check_branch
      %795 = sbr.rel (0) target = $region29
    $region28: #{linear_regression_forward.1} parent=1 // pred_region
      _
    $region29: #{linear_regression_forward.1} parent=1 // pred_fallthru
      _
    // Predicated region
    $region30: #{linear_regression_forward.1} parent=1 // pred_check
      _
    $region31: #{linear_regression_forward.1} parent=1 // pred_check_branch
      %797 = sbr.rel (0) target = $region33
    $region32: #{linear_regression_forward.1} parent=1 // pred_region
      _
    $region33: #{linear_regression_forward.1} parent=1 // pred_fallthru
      _
    %798 = vsyncpa [#allocation3], 1

</llo_original>
